<compile_context>
chip_gen: v6e
topology: v6e:2x2x1
jax: 0.10.0
libtpu: 0.0.40
codegen_flags: <defaults>
</compile_context>

<pallas_src>
import functools

import jax
import jax.numpy as jnp
from jax import lax
from jax.experimental import pallas as pl
from jax.experimental.pallas import tpu as pltpu


def _cel_vector_kernel(logits_ref, tt_ref, w_ref, partial_ref, *,
                       n_rows, tile_rows, exp_in_bf16):
    """Writes the per-tile partial of sum_i( -w_i * log_softmax(logits)[i, tt_i] )."""
    i = pl.program_id(0)

    logits = logits_ref[...].astype(jnp.float32)             # (TN, C) f32 in vregs
    tn, c = logits.shape

    # Numerically-stable log-softmax pieces; log_probs itself is never materialized.
    m = jnp.max(logits, axis=-1, keepdims=True)               # (TN, 1)
    shifted = logits - m                                       # (TN, C), all <= 0
    if exp_in_bf16:
        # Optional v6e/v7x-only EUP micro-opt (bf16 exp ~2x); keeps f32 accumulation.
        e = jnp.exp(shifted.astype(jnp.bfloat16)).astype(jnp.float32)
    else:
        e = jnp.exp(shifted)
    lse = jnp.log(jnp.sum(e, axis=-1, keepdims=True))          # (TN, 1)

    # Gather shifted[i, tt[i]] via a one-hot lane compare (no dynamic vreg gather on TPU).
    tt = tt_ref[...]                                            # (TN, 1) int32
    col = lax.broadcasted_iota(jnp.int32, (tn, c), 1)           # (TN, C)
    picked_shifted = jnp.sum(jnp.where(col == tt, shifted, 0.0),
                             axis=-1, keepdims=True)            # (TN, 1)
    picked = picked_shifted - lse                               # log_prob at target, (TN, 1)

    # Mask rows belonging to the padded tail tile (N not a multiple of tile_rows).
    row = i * tile_rows + lax.broadcasted_iota(jnp.int32, (tn, 1), 0)
    valid = row < n_rows
    w = w_ref[...]                                              # (TN, 1) f32
    l2 = jnp.where(valid, -w * picked, 0.0)

    partial_ref[0, 0] = jnp.sum(l2)                             # scalar -> SMEM


def _round_up(x, m):
    return ((x + m - 1) // m) * m


def class_based_cross_entropy_loss_vector(logits, target, class_weights,
                                          super_classes, prev_passed=None,
                                          *, tile_rows=None, exp_in_bf16=False):
    """JAX/Pallas equivalent of ClassBasedCrossEntropyLossVector.forward."""
    n, c = logits.shape

    # Glue (tiny 1-D gathers) in plain JAX: fine-class -> super-class, per-sample weight.
    truetarget = super_classes.astype(jnp.int32)[target]                 # (N,)
    indexedweights = class_weights.astype(jnp.float32)[truetarget]       # (N,)

    # Pick the row-tile: keep the f32 working block around ~2 MiB (so temps + double
    # buffers fit every generation's scoped-VMEM budget), multiple of 8 sublanes.
    if tile_rows is None:
        tile_rows = (2 * 1024 * 1024) // max(1, c * 4)
        tile_rows = max(8, min(2048, (tile_rows // 8) * 8))
    tile_rows = min(tile_rows, _round_up(n, 8))
    num_tiles = pl.cdiv(n, tile_rows)

    # Explicit scoped-VMEM budget: ~10 live f32-sized (TN, C) buffers (double-buffered
    # input + temporaries) + lane-padded (TN, 128) tt/w blocks + slack.  Capped at 48 MiB
    # so it is always below v7x's 64 MiB physical VMEM.
    f32_block = tile_rows * c * 4
    aux_bytes = 4 * tile_rows * 128 * 4
    vmem_limit = int(min(48 * 1024 * 1024,
                         max(16 * 1024 * 1024,
                             10 * f32_block + aux_bytes + 2 * 1024 * 1024)))

    kernel = functools.partial(_cel_vector_kernel, n_rows=n,
                               tile_rows=tile_rows, exp_in_bf16=exp_in_bf16)

    partials = pl.pallas_call(
        kernel,
        out_shape=jax.ShapeDtypeStruct((num_tiles, 1), jnp.float32),
        grid=(num_tiles,),
        in_specs=[
            pl.BlockSpec((tile_rows, c), lambda i: (i, 0)),   # logits, native dtype
            pl.BlockSpec((tile_rows, 1), lambda i: (i, 0)),   # truetarget column
            pl.BlockSpec((tile_rows, 1), lambda i: (i, 0)),   # per-sample weights column
        ],
        out_specs=pl.BlockSpec((1, 1), lambda i: (i, 0), memory_space=pltpu.SMEM),
        compiler_params=pltpu.CompilerParams(
            dimension_semantics=("parallel",),
            vmem_limit_bytes=vmem_limit),
    )(logits, truetarget.reshape(n, 1), indexedweights.reshape(n, 1))

    loss = jnp.sum(partials) / jnp.sum(indexedweights)
    return loss, prev_passed


def _reference(logits, target, class_weights, super_classes):
    logp = jax.nn.log_softmax(logits.astype(jnp.float32), axis=1)
    tt = super_classes.astype(jnp.int32)[target]
    w = class_weights.astype(jnp.float32)[tt]
    picked = logp[jnp.arange(logits.shape[0]), tt]
    return jnp.sum(-w * picked) / jnp.sum(w)


if __name__ == "__main__":
    key = jax.random.PRNGKey(0)
    k1, k2, k3, k4 = jax.random.split(key, 4)

    NUM_SUPER = 16   # logits classes == number of super-classes == len(class_weights)
    NUM_FINE = 32    # len(super_classes); `target` indexes fine classes

    # Deterministic "module parameters" (no checkpoint load). super_classes stored as int32.
    class_weights = jnp.linspace(0.5, 2.0, NUM_SUPER, dtype=jnp.float32)
    super_classes = (jnp.arange(NUM_FINE) % NUM_SUPER).astype(jnp.int32)

    # --- test 1: basic f32, single tile ---------------------------------------------------
    N = 8
    logits = jax.random.normal(k1, (N, NUM_SUPER), dtype=jnp.float32)
    target = jax.random.randint(k2, (N,), 0, NUM_FINE, dtype=jnp.int32)
    loss, passed = class_based_cross_entropy_loss_vector(
        logits, target, class_weights, super_classes, prev_passed=None)
    loss = jax.block_until_ready(loss)
    ref = jax.block_until_ready(_reference(logits, target, class_weights, super_classes))
    assert jnp.allclose(loss, ref, rtol=1e-5, atol=1e-5), (loss, ref)
    assert passed is None

    # --- test 2: multi-tile grid with a padded (masked) tail tile ---------------------------
    N2 = 20
    logits2 = jax.random.normal(k3, (N2, NUM_SUPER), dtype=jnp.float32)
    target2 = jax.random.randint(k4, (N2,), 0, NUM_FINE, dtype=jnp.int32)
    loss2, _ = class_based_cross_entropy_loss_vector(
        logits2, target2, class_weights, super_classes, tile_rows=8)
    loss2 = jax.block_until_ready(loss2)
    ref2 = jax.block_until_ready(_reference(logits2, target2, class_weights, super_classes))
    assert jnp.allclose(loss2, ref2, rtol=1e-5, atol=1e-5), (loss2, ref2)

    # --- test 3: native bf16 logits (no wrapper up-cast; kernel up-casts per tile) ----------
    logits_bf16 = logits2.astype(jnp.bfloat16)
    loss3, _ = class_based_cross_entropy_loss_vector(
        logits_bf16, target2, class_weights, super_classes, tile_rows=8)
    loss3 = jax.block_until_ready(loss3)
    ref3 = jax.block_until_ready(_reference(logits_bf16, target2, class_weights, super_classes))
    assert jnp.allclose(loss3, ref3, rtol=1e-4, atol=1e-4), (loss3, ref3)

    print("KERNEL_OK")
</pallas_src>

<mosaic_0001>
module attributes {stable_mosaic.version = 11 : i64} {
  func.func @_cel_vector_kernel(%arg0: i32, %arg1: memref<8x16xf32, #tpu.memory_space<vmem>>, %arg2: memref<8x1xi32, #tpu.memory_space<vmem>>, %arg3: memref<8x1xf32, #tpu.memory_space<vmem>>, %arg4: memref<1x1xf32, #tpu.memory_space<smem>>) attributes {dimension_semantics = [#tpu.dimension_semantics<parallel>], iteration_bounds = array<i64: 1>, scalar_prefetch = 0 : i64, scratch_operands = 0 : i64, tpu.core_type = #tpu.core_type<tc>, window_params = [{transform_indices = @transform_0, window_bounds = array<i64: 8, 16>}, {transform_indices = @transform_1, window_bounds = array<i64: 8, 1>}, {transform_indices = @transform_2, window_bounds = array<i64: 8, 1>}, {transform_indices = @transform_3, window_bounds = array<i64: 1, 1>}]} {
    %c0 = arith.constant 0 : index
    %c0_0 = arith.constant 0 : index
    %0 = vector.load %arg1[%c0, %c0_0] : memref<8x16xf32, #tpu.memory_space<vmem>>, vector<8x16xf32>
    %cst = arith.constant dense<0xFF800000> : vector<8xf32>
    %1 = vector.multi_reduction <maximumf>, %0, %cst [1] : vector<8x16xf32> to vector<8xf32>
    %2 = vector.shape_cast %1 : vector<8xf32> to vector<8x1xf32>
    %3 = vector.broadcast %2 : vector<8x1xf32> to vector<8x16xf32>
    %4 = arith.subf %0, %3 : vector<8x16xf32>
    %5 = math.exp %4 : vector<8x16xf32>
    %cst_1 = arith.constant dense<0.000000e+00> : vector<8xf32>
    %6 = vector.multi_reduction <add>, %5, %cst_1 [1] : vector<8x16xf32> to vector<8xf32>
    %7 = vector.shape_cast %6 : vector<8xf32> to vector<8x1xf32>
    %8 = math.log %7 : vector<8x1xf32>
    %c0_2 = arith.constant 0 : index
    %c0_3 = arith.constant 0 : index
    %9 = vector.load %arg2[%c0_2, %c0_3] : memref<8x1xi32, #tpu.memory_space<vmem>>, vector<8x1xi32>
    %10 = tpu.iota {dimensions = array<i32: 1>} : vector<8x16xi32>
    %11 = vector.broadcast %9 : vector<8x1xi32> to vector<8x16xi32>
    %12 = arith.cmpi eq, %10, %11 : vector<8x16xi32>
    %cst_4 = arith.constant 0.000000e+00 : f32
    %13 = vector.broadcast %cst_4 : f32 to vector<8x16xf32>
    %14 = arith.select %12, %4, %13 : vector<8x16xi1>, vector<8x16xf32>
    %cst_5 = arith.constant dense<0.000000e+00> : vector<8xf32>
    %15 = vector.multi_reduction <add>, %14, %cst_5 [1] : vector<8x16xf32> to vector<8xf32>
    %16 = vector.shape_cast %15 : vector<8xf32> to vector<8x1xf32>
    %17 = arith.subf %16, %8 : vector<8x1xf32>
    %c8_i32 = arith.constant 8 : i32
    %18 = arith.muli %arg0, %c8_i32 : i32
    %19 = tpu.iota {dimensions = array<i32: 0>} : vector<8x1xi32>
    %20 = vector.broadcast %18 : i32 to vector<8x1xi32>
    %21 = arith.addi %20, %19 : vector<8x1xi32>
    %c8_i32_6 = arith.constant 8 : i32
    %22 = vector.broadcast %c8_i32_6 : i32 to vector<8x1xi32>
    %23 = arith.cmpi slt, %21, %22 : vector<8x1xi32>
    %c0_7 = arith.constant 0 : index
    %c0_8 = arith.constant 0 : index
    %24 = vector.load %arg3[%c0_7, %c0_8] : memref<8x1xf32, #tpu.memory_space<vmem>>, vector<8x1xf32>
    %cst_9 = arith.constant 0.000000e+00 : f32
    %25 = vector.broadcast %cst_9 : f32 to vector<8x1xf32>
    %26 = arith.subf %25, %24 : vector<8x1xf32>
    %27 = arith.mulf %26, %17 : vector<8x1xf32>
    %cst_10 = arith.constant 0.000000e+00 : f32
    %28 = vector.broadcast %cst_10 : f32 to vector<8x1xf32>
    %29 = arith.select %23, %27, %28 : vector<8x1xi1>, vector<8x1xf32>
    %30 = vector.shape_cast %29 : vector<8x1xf32> to vector<1x8x1xf32>
    %cst_11 = arith.constant dense<0.000000e+00> : vector<1xf32>
    %31 = vector.multi_reduction <add>, %30, %cst_11 [1, 2] : vector<1x8x1xf32> to vector<1xf32>
    %32 = vector.shape_cast %31 : vector<1xf32> to vector<1x1x1xf32>
    %33 = vector.extract %32[0, 0, 0] : f32 from vector<1x1x1xf32>
    %c0_12 = arith.constant 0 : index
    %c0_13 = arith.constant 0 : index
    %34 = memref.load %arg4[%c0_12, %c0_13] : memref<1x1xf32, #tpu.memory_space<smem>>
    memref.store %33, %arg4[%c0_12, %c0_13] : memref<1x1xf32, #tpu.memory_space<smem>>
    return
  }
  func.func @transform_0(%arg0: i32) -> (i32, i32) {
    %c0_i32 = arith.constant 0 : i32
    %c0_i32_0 = arith.constant 0 : i32
    return %arg0, %c0_i32 : i32, i32
  }
  func.func @transform_1(%arg0: i32) -> (i32, i32) {
    %c0_i32 = arith.constant 0 : i32
    %c0_i32_0 = arith.constant 0 : i32
    return %arg0, %c0_i32 : i32, i32
  }
  func.func @transform_2(%arg0: i32) -> (i32, i32) {
    %c0_i32 = arith.constant 0 : i32
    %c0_i32_0 = arith.constant 0 : i32
    return %arg0, %c0_i32 : i32, i32
  }
  func.func @transform_3(%arg0: i32) -> (i32, i32) {
    %c0_i32 = arith.constant 0 : i32
    %c0_i32_0 = arith.constant 0 : i32
    return %arg0, %c0_i32 : i32, i32
  }
}

</mosaic_0001>

<llo_original>
// kernel: tpu_custom_call.1
$region0: #{tpu_custom_call.1}
  #allocation0 [shape = 'u32[]', space=smem, size = 0x4, offset = 0x4, fixed_abs, tag = 'smem constant byte address 0x4 - core index']
  #allocation1 [shape = 'u32[144,128]{1,0:T(1,128)}', space=vmem, size = 0x12000, scoped, tag = 'internal scratch']
  %s0 = inlined_call_operand.vmem [shape: f32[8,16], index: 0, kind: input, shape index: {}]
  %s1 = inlined_call_operand.vmem [shape: s32[8,1], index: 1, kind: input, shape index: {}]
  %s2 = inlined_call_operand.vmem [shape: f32[8,1], index: 2, kind: input, shape index: {}]
  %s3 = inlined_call_operand.hbm [shape: f32[1,1], index: 3, kind: output, shape index: {}]
  %s4 = sld [smem:[#allocation0]]
  $region22: #{tpu_custom_call.1} parent=0
    _
  %s6 = ssub.s32 1, %s4
  %s7 = scalar_select 0, %s6, %s4
  $region1: #{tpu_custom_call.1} parent=0
    #allocation2 [shape = 'u8[512]{0}', space=smem, size = 0x200, scoped, tag = 'output window, operand 0, single buffered']
    #allocation3 [shape = 's32[1]{0}', space=sflag, size = 0x4, scoped, tag = 'scoped memory for tpu_custom_call.1']
    %8 = vsyncpa [#allocation3], 0
    // Predicated region
    $region2: #{tpu_custom_call.1} parent=1 // pred_check
      _
    $region3: #{tpu_custom_call.1} parent=1 // pred_check_branch
      %10 = sbr.rel (0) target = $region5
    $region4: #{tpu_custom_call.1} parent=1 // pred_region
      _
    $region5: #{tpu_custom_call.1} parent=1 // pred_fallthru
      _
    // Predicated region
    $region6: #{tpu_custom_call.1} parent=1 // pred_check
      _
    $region7: #{tpu_custom_call.1} parent=1 // pred_check_branch
      %12 = sbr.rel (0) target = $region9
    $region8: #{tpu_custom_call.1} parent=1 // pred_region
      _
    $region9: #{tpu_custom_call.1} parent=1 // pred_fallthru
      _
    // Predicated region
    $region10: #{tpu_custom_call.1} parent=1 // pred_check
      _
    $region11: #{tpu_custom_call.1} parent=1 // pred_check_branch
      %14 = sbr.rel (0) target = $region13
    $region12: #{tpu_custom_call.1} parent=1 // pred_region
      _
    $region13: #{tpu_custom_call.1} parent=1 // pred_fallthru
      _
    %v15 = vld [vmem:[%s0] sm:$0xff]
    %vm16 = vcmask 130048
    %v17 = vsel %vm16, %v15, -inf
    %18 = vmax.xlane.f32.xlu0 %v17
    %v19 = vpop.xlane.xlu0 %18
    %v20 = vsub.f32 %v15, %v19
    %v21 = vmul.f32 %v20, 1.442695
    %v22 = vpow.pop %v21
    %v23 = vsel %vm16, %v22, 0.0
    %24 = vadd.xlane.f32.xlu0 %v23
    %v25 = vpop.xlane.xlu0 %24
    %v26 = vlog2.pop %v25
    %v27 = vmul.f32 %v26, 0.6931472
    %v28 = vld [vmem:[%s1] sm:$0xff]
    %v29 = vlaneseq
    %v30 = vand.u32 %v29, 127
    %31 = vset.pattern.permute.xlu0 0
    %32 = vperm.xlu0 %31, %v28
    %v33 = vpop.permute.xlu0 %32
    %vm34 = vcmp.eq.s32.totalorder %v30, %v33
    %v35 = vsel %vm34, %v20, 0.0
    %v36 = vsel %vm16, %v35, 0.0
    %37 = vadd.xlane.f32.xlu0 %v36
    %v38 = vpop.xlane.xlu0 %37
    %v39 = vsub.f32 %v38, %v27
    %s40 = smul.u32 0, 8
    %v41 = vlaneseq
    %v42 = vshrl.u32 %v41, 7
    %v43 = vstv %s40
    %v44 = vadd.s32 %v43, %v42
    %vm45 = vcmp.lt.s32.totalorder %v44, 8
    %v46 = vld [vmem:[%s2] sm:$0xff]
    %v47 = vsub.f32 0.0, %v46
    %v48 = vmul.f32 %v47, %v39
    %v49 = vsel %vm45, %v48, 0.0
    %vm50 = vcmask 7168
    %v51 = vsel %vm50, %v49, 0.0
    %52 = vadd.xlane.f32.xlu0 %v51
    %v53 = vpop.xlane.xlu0 %52
    %v54 = vrot.slane %v53, 4
    %v55 = vadd.f32 %v53, %v54
    %v56 = vrot.slane %v55, 2
    %v57 = vadd.f32 %v55, %v56
    %v58 = vrot.slane %v57, 1
    %v59 = vadd.f32 %v57, %v58
    %s60 = vtos %v59
    %s61 = scalar_lea.smem [#allocation2], 0
    %62 = sst [smem:[%s61]] %s60
    // Predicated region
    $region14: #{tpu_custom_call.1} parent=1 // pred_check
      _
    $region15: #{tpu_custom_call.1} parent=1 // pred_check_branch
      %64 = sbr.rel (0) target = $region17
    $region16: #{tpu_custom_call.1} parent=1 // pred_region
      %s66 = ssub.s32 16, 16
      %67 = vsyncadd [#allocation3], %s66
      %70 = dma.smem_to_hbm [#allocation2], 16, %s3, [#allocation3]
    $region17: #{tpu_custom_call.1} parent=1 // pred_fallthru
      _
    // Predicated region
    $region18: #{tpu_custom_call.1} parent=1 // pred_check
      _
    $region19: #{tpu_custom_call.1} parent=1 // pred_check_branch
      %72 = sbr.rel (0) target = $region21
    $region20: #{tpu_custom_call.1} parent=1 // pred_region
      %73 = dma.done [#allocation3], 16
    $region21: #{tpu_custom_call.1} parent=1 // pred_fallthru
      _
    %74 = sfence
    %75 = vsyncpa [#allocation3], 1

</llo_original>
